<compile_context>
chip_gen: v7x
topology: tpu7x:2x2x1
jax: 0.10.0
libtpu: 0.0.40
codegen_flags: <defaults>
</compile_context>

<pallas_src>
import math

import jax
import jax.numpy as jnp
from jax import lax
from jax.experimental import pallas as pl
from jax.experimental.pallas import tpu as pltpu

EPS = 1e-5          # nn.BatchNorm1d default eps
NEG_SLOPE = 0.1     # nn.LeakyReLU(0.1)
H1, H2, H3, HOUT = 256, 128, 64, 1


def _leaky_relu(x):
    return jnp.where(x > 0, x, NEG_SLOPE * x)


def mlp_kernel(x_ref,
               w1_ref, b1_ref,
               w2_ref, b2_ref,
               w3_ref, b3_ref,
               w4t_ref, b4_ref,
               o_ref):
    """Fused 4-layer MLP on one (batch_tile, F) input slab.

    x arrives in natural (batch, feature) layout and is cast to bf16 in VMEM.
    Layer 1 contracts the feature axes of both operands (W1 @ X^T) so the
    result is (H1, batch_tile) with batch on lanes; later layers keep that
    orientation.  Biases already contain the folded BatchNorm shift; matmuls
    are bf16-in / f32-accumulate on the MXU.  Dropout is identity (inference).
    """
    x_bf = x_ref[...].astype(jnp.bfloat16)                               # (bt, F)

    # Layer 1: (H1, F) x (bt, F), contracting the feature axes -> (H1, bt).
    acc = lax.dot_general(w1_ref[...], x_bf,
                          dimension_numbers=(((1,), (1,)), ((), ())),
                          preferred_element_type=jnp.float32)
    h = _leaky_relu(acc + b1_ref[...]).astype(jnp.bfloat16)              # (H1, bt)

    acc = jnp.dot(w2_ref[...], h, preferred_element_type=jnp.float32)
    h = _leaky_relu(acc + b2_ref[...]).astype(jnp.bfloat16)              # (H2, bt)

    acc = jnp.dot(w3_ref[...], h, preferred_element_type=jnp.float32)
    h = _leaky_relu(acc + b3_ref[...])                                   # (H3, bt) f32

    # Layer 4 (1x64): VPU broadcast-multiply + XLU cross-sublane reduce;
    # skips the MXU and keeps the (1, bt) store lane-dense.
    o_ref[...] = jnp.sum(w4t_ref[...] * h, axis=0, keepdims=True) + b4_ref[...]


def init_params(key, input_size):
    """PyTorch-style nn.Linear init (weights stored (out_features, in_features)).

    BatchNorm parameters / running stats get non-trivial values so the
    inference-mode fold is actually exercised (PyTorch's construction defaults
    gamma=1, beta=0, mean=0, var=1 are a trivial special case of the fold).
    """
    def linear(k, fan_in, fan_out):
        kw, kb = jax.random.split(k)
        bound = 1.0 / math.sqrt(fan_in)
        w = jax.random.uniform(kw, (fan_out, fan_in), jnp.float32, -bound, bound)
        b = jax.random.uniform(kb, (fan_out,), jnp.float32, -bound, bound)
        return w, b

    k1, k2, k3, k4, kbn = jax.random.split(key, 5)
    params = {}
    params["w1"], params["b1"] = linear(k1, input_size, H1)
    params["w2"], params["b2"] = linear(k2, H1, H2)
    params["w3"], params["b3"] = linear(k3, H2, H3)
    params["w4"], params["b4"] = linear(k4, H3, HOUT)
    for name, n in (("bn1", H1), ("bn2", H2), ("bn3", H3)):
        kbn, kg, kb2, km, kv = jax.random.split(kbn, 5)
        params[name] = dict(
            gamma=jax.random.uniform(kg, (n,), jnp.float32, 0.5, 1.5),
            beta=0.1 * jax.random.normal(kb2, (n,), jnp.float32),
            mean=0.1 * jax.random.normal(km, (n,), jnp.float32),
            var=jax.random.uniform(kv, (n,), jnp.float32, 0.5, 1.5),
        )
    return params


def _prepare_params(params):
    """Fold inference-mode BatchNorm into the Linear weights/bias.

    Matmul weights go to bf16 (MXU); biases stay f32 (VPU epilogue); w4 is
    pre-transposed to (H3, 1) so the final layer is a pure VPU/XLU reduce.
    """
    def fold(w, b, bn):
        s = bn["gamma"] / jnp.sqrt(bn["var"] + EPS)            # (out,)
        t = bn["beta"] - bn["mean"] * s                        # (out,)
        w_f = (w * s[:, None]).astype(jnp.bfloat16)            # (out, in)
        b_f = (b * s + t).reshape(-1, 1).astype(jnp.float32)   # (out, 1)
        return w_f, b_f

    w1, b1 = fold(params["w1"], params["b1"], params["bn1"])
    w2, b2 = fold(params["w2"], params["b2"], params["bn2"])
    w3, b3 = fold(params["w3"], params["b3"], params["bn3"])
    w4t = params["w4"].T.astype(jnp.float32)                   # (H3, 1)
    b4 = params["b4"].reshape(1, 1).astype(jnp.float32)        # (1, 1)
    return w1, b1, w2, b2, w3, b3, w4t, b4


def bpm_predictor_forward(x, params, *, batch_tile=1024):
    """x: (B, ...) flattened like x.view(B, -1).  Returns (B, 1) float32."""
    B = x.shape[0]
    x2 = x.reshape(B, -1)                      # natural (B, F) layout, no extra HBM pass
    F = x2.shape[1]

    w1, b1, w2, b2, w3, b3, w4t, b4 = _prepare_params(params)

    # Tile selection: multiples of 128 (lane width).  Caller value is an upper
    # bound (default 1024 is VMEM-safe on v5e/v6e/v7x; sweep up to 4096 on
    # v6e/v7x, cap ~2048 under v5e's 16 MiB scoped VMEM).  Shrink so the
    # "parallel" grid axis has >= 2 tiles when B allows it (v7x 2-TC sharding).
    batch_tile = 128 * pl.cdiv(batch_tile, 128)
    bt = min(batch_tile, max(128, 128 * pl.cdiv(pl.cdiv(B, 2), 128)))
    num_tiles = pl.cdiv(B, bt)                 # ragged last tile handled by Pallas

    const = lambda shape: pl.BlockSpec(shape, lambda i: (0, 0))

    flops = 2 * B * (F * H1 + H1 * H2 + H2 * H3 + H3 * HOUT)
    weight_bytes = (2 * (H1 * F + H2 * H1 + H3 * H2 + H3 * HOUT)
                    + 4 * (H1 + H2 + H3 + HOUT))
    bytes_accessed = B * F * x2.dtype.itemsize + B * 4 + weight_bytes

    out = pl.pallas_call(
        mlp_kernel,
        out_shape=jax.ShapeDtypeStruct((1, B), jnp.float32),
        grid=(num_tiles,),
        in_specs=[
            pl.BlockSpec((bt, F), lambda i: (i, 0)),           # x slab, natural layout
            const((H1, F)), const((H1, 1)),
            const((H2, H1)), const((H2, 1)),
            const((H3, H2)), const((H3, 1)),
            const((H3, 1)), const((1, 1)),
        ],
        out_specs=pl.BlockSpec((1, bt), lambda i: (0, i)),     # lane-dense output
        compiler_params=pltpu.CompilerParams(
            dimension_semantics=("parallel",)),
        cost_estimate=pl.CostEstimate(flops=flops, transcendentals=0,
                                      bytes_accessed=bytes_accessed),
    )(x2, w1, b1, w2, b2, w3, b3, w4t, b4)

    return out.T                                               # (B, 1)


def reference_forward(x, params):
    """Plain-JAX fp32 reference with the PyTorch inference-mode semantics."""
    B = x.shape[0]
    h = x.reshape(B, -1).astype(jnp.float32)

    def bn(v, p):
        return (v - p["mean"]) / jnp.sqrt(p["var"] + EPS) * p["gamma"] + p["beta"]

    h = _leaky_relu(bn(h @ params["w1"].T + params["b1"], params["bn1"]))
    h = _leaky_relu(bn(h @ params["w2"].T + params["b2"], params["bn2"]))
    h = _leaky_relu(bn(h @ params["w3"].T + params["b3"], params["bn3"]))
    return h @ params["w4"].T + params["b4"]                   # (B, 1)


if __name__ == "__main__":
    key = jax.random.PRNGKey(0)
    k_x, k_x2 = jax.random.split(key)

    B, C, S = 8, 4, 8                 # x.view(B, -1) -> input_size = 32
    input_size = C * S
    params = init_params(jax.random.PRNGKey(42), input_size)

    # Small-batch path (single ragged tile, block overhangs the batch).
    x = jax.random.normal(k_x, (B, C, S), jnp.float32)
    y = jax.block_until_ready(bpm_predictor_forward(x, params))
    y_ref = reference_forward(x, params)
    assert y.shape == (B, 1)
    assert jnp.allclose(y, y_ref, atol=2e-2, rtol=2e-2), \
        "mismatch vs fp32 reference (small batch)"

    # Multi-tile path: non-divisible batch -> 2 parallel tiles + ragged tail.
    B2 = 300
    x2 = jax.random.normal(k_x2, (B2, C, S), jnp.float32)
    y2 = jax.block_until_ready(bpm_predictor_forward(x2, params))
    y2_ref = reference_forward(x2, params)
    assert y2.shape == (B2, 1)
    assert jnp.allclose(y2, y2_ref, atol=2e-2, rtol=2e-2), \
        "mismatch vs fp32 reference (multi-tile)"

    print("KERNEL_OK")
</pallas_src>

<mosaic_0001>
module attributes {stable_mosaic.version = 11 : i64} {
  func.func @mlp_kernel(%arg0: i32, %arg1: memref<128x32xf32, #tpu.memory_space<vmem>>, %arg2: memref<256x32xbf16, #tpu.memory_space<vmem>>, %arg3: memref<256x1xf32, #tpu.memory_space<vmem>>, %arg4: memref<128x256xbf16, #tpu.memory_space<vmem>>, %arg5: memref<128x1xf32, #tpu.memory_space<vmem>>, %arg6: memref<64x128xbf16, #tpu.memory_space<vmem>>, %arg7: memref<64x1xf32, #tpu.memory_space<vmem>>, %arg8: memref<64x1xf32, #tpu.memory_space<vmem>>, %arg9: memref<1x1xf32, #tpu.memory_space<vmem>>, %arg10: memref<1x128xf32, #tpu.memory_space<vmem>>) attributes {dimension_semantics = [#tpu.dimension_semantics<parallel>], iteration_bounds = array<i64: 1>, scalar_prefetch = 0 : i64, scratch_operands = 0 : i64, tpu.core_type = #tpu.core_type<tc>, window_params = [{transform_indices = @transform_0, window_bounds = array<i64: 128, 32>}, {pipeline_mode = #tpu.pipeline_mode<synchronous>, transform_indices = @transform_1, window_bounds = array<i64: 256, 32>}, {pipeline_mode = #tpu.pipeline_mode<synchronous>, transform_indices = @transform_2, window_bounds = array<i64: 256, 1>}, {pipeline_mode = #tpu.pipeline_mode<synchronous>, transform_indices = @transform_3, window_bounds = array<i64: 128, 256>}, {pipeline_mode = #tpu.pipeline_mode<synchronous>, transform_indices = @transform_4, window_bounds = array<i64: 128, 1>}, {pipeline_mode = #tpu.pipeline_mode<synchronous>, transform_indices = @transform_5, window_bounds = array<i64: 64, 128>}, {pipeline_mode = #tpu.pipeline_mode<synchronous>, transform_indices = @transform_6, window_bounds = array<i64: 64, 1>}, {pipeline_mode = #tpu.pipeline_mode<synchronous>, transform_indices = @transform_7, window_bounds = array<i64: 64, 1>}, {pipeline_mode = #tpu.pipeline_mode<synchronous>, transform_indices = @transform_8, window_bounds = array<i64: 1, 1>}, {transform_indices = @transform_9, window_bounds = array<i64: 1, 128>}]} {
    %c0 = arith.constant 0 : index
    %c0_0 = arith.constant 0 : index
    %0 = vector.load %arg1[%c0, %c0_0] : memref<128x32xf32, #tpu.memory_space<vmem>>, vector<128x32xf32>
    %1 = arith.truncf %0 : vector<128x32xf32> to vector<128x32xbf16>
    %c0_1 = arith.constant 0 : index
    %c0_2 = arith.constant 0 : index
    %2 = vector.load %arg2[%c0_1, %c0_2] : memref<256x32xbf16, #tpu.memory_space<vmem>>, vector<256x32xbf16>
    %cst = arith.constant dense<0.000000e+00> : vector<256x128xf32>
    %3 = tpu.matmul %2, %1, %cst {dimension_numbers = #tpu.dot_dimension_numbers<[1], [1], [0], [0], [0, 0, 1, 0], [], []>} : vector<256x32xbf16>, vector<128x32xbf16>, vector<256x128xf32> -> vector<256x128xf32>
    %c0_3 = arith.constant 0 : index
    %c0_4 = arith.constant 0 : index
    %4 = vector.load %arg3[%c0_3, %c0_4] : memref<256x1xf32, #tpu.memory_space<vmem>>, vector<256x1xf32>
    %5 = vector.broadcast %4 : vector<256x1xf32> to vector<256x128xf32>
    %6 = arith.addf %3, %5 : vector<256x128xf32>
    %cst_5 = arith.constant 0.000000e+00 : f32
    %7 = vector.broadcast %cst_5 : f32 to vector<256x128xf32>
    %8 = arith.cmpf ogt, %6, %7 : vector<256x128xf32>
    %cst_6 = arith.constant 1.000000e-01 : f32
    %9 = vector.broadcast %cst_6 : f32 to vector<256x128xf32>
    %10 = arith.mulf %9, %6 : vector<256x128xf32>
    %11 = arith.select %8, %6, %10 : vector<256x128xi1>, vector<256x128xf32>
    %12 = arith.truncf %11 : vector<256x128xf32> to vector<256x128xbf16>
    %c0_7 = arith.constant 0 : index
    %c0_8 = arith.constant 0 : index
    %13 = vector.load %arg4[%c0_7, %c0_8] : memref<128x256xbf16, #tpu.memory_space<vmem>>, vector<128x256xbf16>
    %cst_9 = arith.constant dense<0.000000e+00> : vector<128x128xf32>
    %14 = tpu.matmul %13, %12, %cst_9 {dimension_numbers = #tpu.dot_dimension_numbers<[1], [0], [0], [1], [0, 0, 1, 1], [], []>} : vector<128x256xbf16>, vector<256x128xbf16>, vector<128x128xf32> -> vector<128x128xf32>
    %c0_10 = arith.constant 0 : index
    %c0_11 = arith.constant 0 : index
    %15 = vector.load %arg5[%c0_10, %c0_11] : memref<128x1xf32, #tpu.memory_space<vmem>>, vector<128x1xf32>
    %16 = vector.broadcast %15 : vector<128x1xf32> to vector<128x128xf32>
    %17 = arith.addf %14, %16 : vector<128x128xf32>
    %cst_12 = arith.constant 0.000000e+00 : f32
    %18 = vector.broadcast %cst_12 : f32 to vector<128x128xf32>
    %19 = arith.cmpf ogt, %17, %18 : vector<128x128xf32>
    %cst_13 = arith.constant 1.000000e-01 : f32
    %20 = vector.broadcast %cst_13 : f32 to vector<128x128xf32>
    %21 = arith.mulf %20, %17 : vector<128x128xf32>
    %22 = arith.select %19, %17, %21 : vector<128x128xi1>, vector<128x128xf32>
    %23 = arith.truncf %22 : vector<128x128xf32> to vector<128x128xbf16>
    %c0_14 = arith.constant 0 : index
    %c0_15 = arith.constant 0 : index
    %24 = vector.load %arg6[%c0_14, %c0_15] : memref<64x128xbf16, #tpu.memory_space<vmem>>, vector<64x128xbf16>
    %cst_16 = arith.constant dense<0.000000e+00> : vector<64x128xf32>
    %25 = tpu.matmul %24, %23, %cst_16 {dimension_numbers = #tpu.dot_dimension_numbers<[1], [0], [0], [1], [0, 0, 1, 1], [], []>} : vector<64x128xbf16>, vector<128x128xbf16>, vector<64x128xf32> -> vector<64x128xf32>
    %c0_17 = arith.constant 0 : index
    %c0_18 = arith.constant 0 : index
    %26 = vector.load %arg7[%c0_17, %c0_18] : memref<64x1xf32, #tpu.memory_space<vmem>>, vector<64x1xf32>
    %27 = vector.broadcast %26 : vector<64x1xf32> to vector<64x128xf32>
    %28 = arith.addf %25, %27 : vector<64x128xf32>
    %cst_19 = arith.constant 0.000000e+00 : f32
    %29 = vector.broadcast %cst_19 : f32 to vector<64x128xf32>
    %30 = arith.cmpf ogt, %28, %29 : vector<64x128xf32>
    %cst_20 = arith.constant 1.000000e-01 : f32
    %31 = vector.broadcast %cst_20 : f32 to vector<64x128xf32>
    %32 = arith.mulf %31, %28 : vector<64x128xf32>
    %33 = arith.select %30, %28, %32 : vector<64x128xi1>, vector<64x128xf32>
    %c0_21 = arith.constant 0 : index
    %c0_22 = arith.constant 0 : index
    %34 = vector.load %arg8[%c0_21, %c0_22] : memref<64x1xf32, #tpu.memory_space<vmem>>, vector<64x1xf32>
    %35 = vector.broadcast %34 : vector<64x1xf32> to vector<64x128xf32>
    %36 = arith.mulf %35, %33 : vector<64x128xf32>
    %cst_23 = arith.constant dense<0.000000e+00> : vector<128xf32>
    %37 = vector.multi_reduction <add>, %36, %cst_23 [0] : vector<64x128xf32> to vector<128xf32>
    %38 = vector.shape_cast %37 : vector<128xf32> to vector<1x128xf32>
    %c0_24 = arith.constant 0 : index
    %c0_25 = arith.constant 0 : index
    %39 = vector.load %arg9[%c0_24, %c0_25] : memref<1x1xf32, #tpu.memory_space<vmem>>, vector<1x1xf32>
    %40 = vector.broadcast %39 : vector<1x1xf32> to vector<1x128xf32>
    %41 = arith.addf %38, %40 : vector<1x128xf32>
    %c0_26 = arith.constant 0 : index
    %c0_27 = arith.constant 0 : index
    %42 = vector.load %arg10[%c0_26, %c0_27] : memref<1x128xf32, #tpu.memory_space<vmem>>, vector<1x128xf32>
    tpu.vector_store %arg10[%c0_26, %c0_27], %41 {strides = array<i32>} : memref<1x128xf32, #tpu.memory_space<vmem>>, vector<1x128xf32>,
    return
  }
  func.func @transform_0(%arg0: i32) -> (i32, i32) {
    %c0_i32 = arith.constant 0 : i32
    %c0_i32_0 = arith.constant 0 : i32
    return %arg0, %c0_i32 : i32, i32
  }
  func.func @transform_1(%arg0: i32) -> (i32, i32) {
    %c0_i32 = arith.constant 0 : i32
    %c0_i32_0 = arith.constant 0 : i32
    %c0_i32_1 = arith.constant 0 : i32
    return %c0_i32, %c0_i32_0 : i32, i32
  }
  func.func @transform_2(%arg0: i32) -> (i32, i32) {
    %c0_i32 = arith.constant 0 : i32
    %c0_i32_0 = arith.constant 0 : i32
    %c0_i32_1 = arith.constant 0 : i32
    return %c0_i32, %c0_i32_0 : i32, i32
  }
  func.func @transform_3(%arg0: i32) -> (i32, i32) {
    %c0_i32 = arith.constant 0 : i32
    %c0_i32_0 = arith.constant 0 : i32
    %c0_i32_1 = arith.constant 0 : i32
    return %c0_i32, %c0_i32_0 : i32, i32
  }
  func.func @transform_4(%arg0: i32) -> (i32, i32) {
    %c0_i32 = arith.constant 0 : i32
    %c0_i32_0 = arith.constant 0 : i32
    %c0_i32_1 = arith.constant 0 : i32
    return %c0_i32, %c0_i32_0 : i32, i32
  }
  func.func @transform_5(%arg0: i32) -> (i32, i32) {
    %c0_i32 = arith.constant 0 : i32
    %c0_i32_0 = arith.constant 0 : i32
    %c0_i32_1 = arith.constant 0 : i32
    return %c0_i32, %c0_i32_0 : i32, i32
  }
  func.func @transform_6(%arg0: i32) -> (i32, i32) {
    %c0_i32 = arith.constant 0 : i32
    %c0_i32_0 = arith.constant 0 : i32
    %c0_i32_1 = arith.constant 0 : i32
    return %c0_i32, %c0_i32_0 : i32, i32
  }
  func.func @transform_7(%arg0: i32) -> (i32, i32) {
    %c0_i32 = arith.constant 0 : i32
    %c0_i32_0 = arith.constant 0 : i32
    %c0_i32_1 = arith.constant 0 : i32
    return %c0_i32, %c0_i32_0 : i32, i32
  }
  func.func @transform_8(%arg0: i32) -> (i32, i32) {
    %c0_i32 = arith.constant 0 : i32
    %c0_i32_0 = arith.constant 0 : i32
    %c0_i32_1 = arith.constant 0 : i32
    return %c0_i32, %c0_i32_0 : i32, i32
  }
  func.func @transform_9(%arg0: i32) -> (i32, i32) {
    %c0_i32 = arith.constant 0 : i32
    %c0_i32_0 = arith.constant 0 : i32
    return %c0_i32, %arg0 : i32, i32
  }
}

</mosaic_0001>

<llo_original>
// kernel: tpu_custom_call.1
$region0: #{tpu_custom_call.1}
  #allocation0 [shape = 'u32[]', space=smem, size = 0x4, offset = 0x4, fixed_abs, tag = 'smem constant byte address 0x4 - core index']
  #allocation1 [shape = 'u32[144,128]{1,0:T(1,128)}', space=vmem, size = 0x12000, scoped, tag = 'internal scratch']
  #allocation2 [shape = 'f32[1,1]{1,0:T(1,128)S(1)}', space=vmem, size = 0x200, scoped, tag = 'scoped memory for tpu_custom_call.1']
  %s0 = inlined_call_operand.vmem [shape: f32[8,32], index: 0, kind: input, shape index: {}]
  %s1 = inlined_call_operand.vmem [shape: bf16[256,32], index: 1, kind: input, shape index: {}]
  %s2 = inlined_call_operand.vmem [shape: f32[256,1], index: 2, kind: input, shape index: {}]
  %s3 = inlined_call_operand.vmem [shape: bf16[128,256], index: 3, kind: input, shape index: {}]
  %s4 = inlined_call_operand.vmem [shape: f32[128,1], index: 4, kind: input, shape index: {}]
  %s5 = inlined_call_operand.vmem [shape: bf16[64,128], index: 5, kind: input, shape index: {}]
  %s6 = inlined_call_operand.vmem [shape: f32[64,1], index: 6, kind: input, shape index: {}]
  %s7 = inlined_call_operand.vmem [shape: f32[64,1], index: 7, kind: input, shape index: {}]
  %s8 = inlined_call_operand.<no memory space> [shape: f32[1,1], index: 8, kind: input, shape index: {}]
  %s9 = inlined_call_operand.hbm [shape: f32[1,8], index: 9, kind: output, shape index: {}]
  %s10 = sld [smem:[#allocation0]]
  $region46: #{tpu_custom_call.1} parent=0
    _
  %s12 = ssub.s32 1, %s10
  %s13 = scalar_select 0, %s12, %s10
  %v14 = vstv %s8
  %15 = vst [vmem:[#allocation2] sm:$0x1] %v14
  $region1: #{tpu_custom_call.1} parent=0
    #allocation3 [shape = 'u8[512]{0}', space=vmem, size = 0x400, scoped, tag = 'output window, operand 0, single buffered']
    #allocation4 [shape = 's32[1]{0}', space=sflag, size = 0x4, scoped, tag = 'scoped memory for tpu_custom_call.1']
    %16 = vsyncpa [#allocation4], 0
    // Predicated region
    $region2: #{tpu_custom_call.1} parent=1 // pred_check
      _
    $region3: #{tpu_custom_call.1} parent=1 // pred_check_branch
      %18 = sbr.rel (0) target = $region5
    $region4: #{tpu_custom_call.1} parent=1 // pred_region
      _
    $region5: #{tpu_custom_call.1} parent=1 // pred_fallthru
      _
    // Predicated region
    $region6: #{tpu_custom_call.1} parent=1 // pred_check
      _
    $region7: #{tpu_custom_call.1} parent=1 // pred_check_branch
      %20 = sbr.rel (0) target = $region9
    $region8: #{tpu_custom_call.1} parent=1 // pred_region
      _
    $region9: #{tpu_custom_call.1} parent=1 // pred_fallthru
      _
    // Predicated region
    $region10: #{tpu_custom_call.1} parent=1 // pred_check
      _
    $region11: #{tpu_custom_call.1} parent=1 // pred_check_branch
      %22 = sbr.rel (0) target = $region13
    $region12: #{tpu_custom_call.1} parent=1 // pred_region
      _
    $region13: #{tpu_custom_call.1} parent=1 // pred_fallthru
      _
    // Predicated region
    $region14: #{tpu_custom_call.1} parent=1 // pred_check
      _
    $region15: #{tpu_custom_call.1} parent=1 // pred_check_branch
      %24 = sbr.rel (0) target = $region17
    $region16: #{tpu_custom_call.1} parent=1 // pred_region
      _
    $region17: #{tpu_custom_call.1} parent=1 // pred_fallthru
      _
    // Predicated region
    $region18: #{tpu_custom_call.1} parent=1 // pred_check
      _
    $region19: #{tpu_custom_call.1} parent=1 // pred_check_branch
      %26 = sbr.rel (0) target = $region21
    $region20: #{tpu_custom_call.1} parent=1 // pred_region
      _
    $region21: #{tpu_custom_call.1} parent=1 // pred_fallthru
      _
    // Predicated region
    $region22: #{tpu_custom_call.1} parent=1 // pred_check
      _
    $region23: #{tpu_custom_call.1} parent=1 // pred_check_branch
      %28 = sbr.rel (0) target = $region25
    $region24: #{tpu_custom_call.1} parent=1 // pred_region
      _
    $region25: #{tpu_custom_call.1} parent=1 // pred_fallthru
      _
    // Predicated region
    $region26: #{tpu_custom_call.1} parent=1 // pred_check
      _
    $region27: #{tpu_custom_call.1} parent=1 // pred_check_branch
      %30 = sbr.rel (0) target = $region29
    $region28: #{tpu_custom_call.1} parent=1 // pred_region
      _
    $region29: #{tpu_custom_call.1} parent=1 // pred_fallthru
      _
    // Predicated region
    $region30: #{tpu_custom_call.1} parent=1 // pred_check
      _
    $region31: #{tpu_custom_call.1} parent=1 // pred_check_branch
      %32 = sbr.rel (0) target = $region33
    $region32: #{tpu_custom_call.1} parent=1 // pred_region
      _
    $region33: #{tpu_custom_call.1} parent=1 // pred_fallthru
      _
    // Predicated region
    $region34: #{tpu_custom_call.1} parent=1 // pred_check
      _
    $region35: #{tpu_custom_call.1} parent=1 // pred_check_branch
      %34 = sbr.rel (0) target = $region37
    $region36: #{tpu_custom_call.1} parent=1 // pred_region
      _
    $region37: #{tpu_custom_call.1} parent=1 // pred_fallthru
      _
    %v36 = vld [vmem:[%s0] sm:$0xff]
    %v37 = vld [vmem:[%s0 + $0x8] sm:$0xff]
    %v38 = vld [vmem:[%s0 + $0x10] sm:$0xff]
    %v39 = vld [vmem:[%s0 + $0x18] sm:$0xff]
    %v40 = vld [vmem:[%s0 + $0x20] sm:$0xff]
    %v41 = vld [vmem:[%s0 + $0x28] sm:$0xff]
    %v42 = vld [vmem:[%s0 + $0x30] sm:$0xff]
    %v43 = vld [vmem:[%s0 + $0x38] sm:$0xff]
    %v44 = vld [vmem:[%s0 + $0x40] sm:$0xff]
    %v45 = vld [vmem:[%s0 + $0x48] sm:$0xff]
    %v46 = vld [vmem:[%s0 + $0x50] sm:$0xff]
    %v47 = vld [vmem:[%s0 + $0x58] sm:$0xff]
    %v48 = vld [vmem:[%s0 + $0x60] sm:$0xff]
    %v49 = vld [vmem:[%s0 + $0x68] sm:$0xff]
    %v50 = vld [vmem:[%s0 + $0x70] sm:$0xff]
    %v51 = vld [vmem:[%s0 + $0x78] sm:$0xff]
    %v52 = vpack.c.bf16 %v37, %v36
    %v53 = vpack.c.bf16 %v39, %v38
    %v54 = vpack.c.bf16 %v41, %v40
    %v55 = vpack.c.bf16 %v43, %v42
    %v56 = vpack.c.bf16 %v45, %v44
    %v57 = vpack.c.bf16 %v47, %v46
    %v58 = vpack.c.bf16 %v49, %v48
    %v59 = vpack.c.bf16 %v51, %v50
    %v60 = vld [vmem:[%s1] sm:$0xf]
    %v61 = vld [vmem:[%s1 + $0x4] sm:$0xf]
    %v62 = vld [vmem:[%s1 + $0x8] sm:$0xf]
    %v63 = vld [vmem:[%s1 + $0xc] sm:$0xf]
    %v64 = vld [vmem:[%s1 + $0x10] sm:$0xf]
    %v65 = vld [vmem:[%s1 + $0x14] sm:$0xf]
    %v66 = vld [vmem:[%s1 + $0x18] sm:$0xf]
    %v67 = vld [vmem:[%s1 + $0x1c] sm:$0xf]
    %v68 = vld [vmem:[%s1 + $0x20] sm:$0xf]
    %v69 = vld [vmem:[%s1 + $0x24] sm:$0xf]
    %v70 = vld [vmem:[%s1 + $0x28] sm:$0xf]
    %v71 = vld [vmem:[%s1 + $0x2c] sm:$0xf]
    %v72 = vld [vmem:[%s1 + $0x30] sm:$0xf]
    %v73 = vld [vmem:[%s1 + $0x34] sm:$0xf]
    %v74 = vld [vmem:[%s1 + $0x38] sm:$0xf]
    %v75 = vld [vmem:[%s1 + $0x3c] sm:$0xf]
    %v76 = vld [vmem:[%s1 + $0x40] sm:$0xf]
    %v77 = vld [vmem:[%s1 + $0x44] sm:$0xf]
    %v78 = vld [vmem:[%s1 + $0x48] sm:$0xf]
    %v79 = vld [vmem:[%s1 + $0x4c] sm:$0xf]
    %v80 = vld [vmem:[%s1 + $0x50] sm:$0xf]
    %v81 = vld [vmem:[%s1 + $0x54] sm:$0xf]
    %v82 = vld [vmem:[%s1 + $0x58] sm:$0xf]
    %v83 = vld [vmem:[%s1 + $0x5c] sm:$0xf]
    %v84 = vld [vmem:[%s1 + $0x60] sm:$0xf]
    %v85 = vld [vmem:[%s1 + $0x64] sm:$0xf]
    %v86 = vld [vmem:[%s1 + $0x68] sm:$0xf]
    %v87 = vld [vmem:[%s1 + $0x6c] sm:$0xf]
    %v88 = vld [vmem:[%s1 + $0x70] sm:$0xf]
    %v89 = vld [vmem:[%s1 + $0x74] sm:$0xf]
    %v90 = vld [vmem:[%s1 + $0x78] sm:$0xf]
    %v91 = vld [vmem:[%s1 + $0x7c] sm:$0xf]
    %v92 = vld [vmem:[%s2] sm:$0xff]
    %v93 = vld [vmem:[%s2 + $0x8] sm:$0xff]
    %v94 = vld [vmem:[%s2 + $0x10] sm:$0xff]
    %v95 = vld [vmem:[%s2 + $0x18] sm:$0xff]
    %v96 = vld [vmem:[%s2 + $0x20] sm:$0xff]
    %v97 = vld [vmem:[%s2 + $0x28] sm:$0xff]
    %v98 = vld [vmem:[%s2 + $0x30] sm:$0xff]
    %v99 = vld [vmem:[%s2 + $0x38] sm:$0xff]
    %v100 = vld [vmem:[%s2 + $0x40] sm:$0xff]
    %v101 = vld [vmem:[%s2 + $0x48] sm:$0xff]
    %v102 = vld [vmem:[%s2 + $0x50] sm:$0xff]
    %v103 = vld [vmem:[%s2 + $0x58] sm:$0xff]
    %v104 = vld [vmem:[%s2 + $0x60] sm:$0xff]
    %v105 = vld [vmem:[%s2 + $0x68] sm:$0xff]
    %v106 = vld [vmem:[%s2 + $0x70] sm:$0xff]
    %v107 = vld [vmem:[%s2 + $0x78] sm:$0xff]
    %v108 = vld [vmem:[%s2 + $0x80] sm:$0xff]
    %v109 = vld [vmem:[%s2 + $0x88] sm:$0xff]
    %v110 = vld [vmem:[%s2 + $0x90] sm:$0xff]
    %v111 = vld [vmem:[%s2 + $0x98] sm:$0xff]
    %v112 = vld [vmem:[%s2 + $0xa0] sm:$0xff]
    %v113 = vld [vmem:[%s2 + $0xa8] sm:$0xff]
    %v114 = vld [vmem:[%s2 + $0xb0] sm:$0xff]
    %v115 = vld [vmem:[%s2 + $0xb8] sm:$0xff]
    %v116 = vld [vmem:[%s2 + $0xc0] sm:$0xff]
    %v117 = vld [vmem:[%s2 + $0xc8] sm:$0xff]
    %v118 = vld [vmem:[%s2 + $0xd0] sm:$0xff]
    %v119 = vld [vmem:[%s2 + $0xd8] sm:$0xff]
    %v120 = vld [vmem:[%s2 + $0xe0] sm:$0xff]
    %v121 = vld [vmem:[%s2 + $0xe8] sm:$0xff]
    %v122 = vld [vmem:[%s2 + $0xf0] sm:$0xff]
    %v123 = vld [vmem:[%s2 + $0xf8] sm:$0xff]
    %125 = vset.pattern.permute.xlu0 0
    %126 = vperm.xlu0 %125, %v92
    %v127 = vpop.permute.xlu0 %126
    %130 = vset.pattern.permute.xlu0 0
    %131 = vperm.xlu0 %130, %v93
    %v132 = vpop.permute.xlu0 %131
    %135 = vset.pattern.permute.xlu0 0
    %136 = vperm.xlu0 %135, %v94
    %v137 = vpop.permute.xlu0 %136
    %140 = vset.pattern.permute.xlu0 0
    %141 = vperm.xlu0 %140, %v95
    %v142 = vpop.permute.xlu0 %141
    %145 = vset.pattern.permute.xlu0 0
    %146 = vperm.xlu0 %145, %v96
    %v147 = vpop.permute.xlu0 %146
    %150 = vset.pattern.permute.xlu0 0
    %151 = vperm.xlu0 %150, %v97
    %v152 = vpop.permute.xlu0 %151
    %155 = vset.pattern.permute.xlu0 0
    %156 = vperm.xlu0 %155, %v98
    %v157 = vpop.permute.xlu0 %156
    %160 = vset.pattern.permute.xlu0 0
    %161 = vperm.xlu0 %160, %v99
    %v162 = vpop.permute.xlu0 %161
    %165 = vset.pattern.permute.xlu0 0
    %166 = vperm.xlu0 %165, %v100
    %v167 = vpop.permute.xlu0 %166
    %170 = vset.pattern.permute.xlu0 0
    %171 = vperm.xlu0 %170, %v101
    %v172 = vpop.permute.xlu0 %171
    %175 = vset.pattern.permute.xlu0 0
    %176 = vperm.xlu0 %175, %v102
    %v177 = vpop.permute.xlu0 %176
    %180 = vset.pattern.permute.xlu0 0
    %181 = vperm.xlu0 %180, %v103
    %v182 = vpop.permute.xlu0 %181
    %185 = vset.pattern.permute.xlu0 0
    %186 = vperm.xlu0 %185, %v104
    %v187 = vpop.permute.xlu0 %186
    %190 = vset.pattern.permute.xlu0 0
    %191 = vperm.xlu0 %190, %v105
    %v192 = vpop.permute.xlu0 %191
    %195 = vset.pattern.permute.xlu0 0
    %196 = vperm.xlu0 %195, %v106
    %v197 = vpop.permute.xlu0 %196
    %200 = vset.pattern.permute.xlu0 0
    %201 = vperm.xlu0 %200, %v107
    %v202 = vpop.permute.xlu0 %201
    %205 = vset.pattern.permute.xlu0 0
    %206 = vperm.xlu0 %205, %v108
    %v207 = vpop.permute.xlu0 %206
    %210 = vset.pattern.permute.xlu0 0
    %211 = vperm.xlu0 %210, %v109
    %v212 = vpop.permute.xlu0 %211
    %215 = vset.pattern.permute.xlu0 0
    %216 = vperm.xlu0 %215, %v110
    %v217 = vpop.permute.xlu0 %216
    %220 = vset.pattern.permute.xlu0 0
    %221 = vperm.xlu0 %220, %v111
    %v222 = vpop.permute.xlu0 %221
    %225 = vset.pattern.permute.xlu0 0
    %226 = vperm.xlu0 %225, %v112
    %v227 = vpop.permute.xlu0 %226
    %230 = vset.pattern.permute.xlu0 0
    %231 = vperm.xlu0 %230, %v113
    %v232 = vpop.permute.xlu0 %231
    %235 = vset.pattern.permute.xlu0 0
    %236 = vperm.xlu0 %235, %v114
    %v237 = vpop.permute.xlu0 %236
    %240 = vset.pattern.permute.xlu0 0
    %241 = vperm.xlu0 %240, %v115
    %v242 = vpop.permute.xlu0 %241
    %245 = vset.pattern.permute.xlu0 0
    %246 = vperm.xlu0 %245, %v116
    %v247 = vpop.permute.xlu0 %246
    %250 = vset.pattern.permute.xlu0 0
    %251 = vperm.xlu0 %250, %v117
    %v252 = vpop.permute.xlu0 %251
    %255 = vset.pattern.permute.xlu0 0
    %256 = vperm.xlu0 %255, %v118
    %v257 = vpop.permute.xlu0 %256
    %260 = vset.pattern.permute.xlu0 0
    %261 = vperm.xlu0 %260, %v119
    %v262 = vpop.permute.xlu0 %261
    %265 = vset.pattern.permute.xlu0 0
    %266 = vperm.xlu0 %265, %v120
    %v267 = vpop.permute.xlu0 %266
    %270 = vset.pattern.permute.xlu0 0
    %271 = vperm.xlu0 %270, %v121
    %v272 = vpop.permute.xlu0 %271
    %275 = vset.pattern.permute.xlu0 0
    %276 = vperm.xlu0 %275, %v122
    %v277 = vpop.permute.xlu0 %276
    %280 = vset.pattern.permute.xlu0 0
    %281 = vperm.xlu0 %280, %v123
    %v282 = vpop.permute.xlu0 %281
    %v316 = vunpack.c.l.b16 %v60
    %v317 = vunpack.c.l.b16 %v61
    %v318 = vunpack.c.l.b16 %v62
    %v319 = vunpack.c.l.b16 %v63
    %v320 = vunpack.c.l.b16 %v64
    %v321 = vunpack.c.l.b16 %v65
    %v322 = vunpack.c.l.b16 %v66
    %v323 = vunpack.c.l.b16 %v67
    %v324 = vunpack.c.l.b16 %v68
    %v325 = vunpack.c.l.b16 %v69
    %v326 = vunpack.c.l.b16 %v70
    %v327 = vunpack.c.l.b16 %v71
    %v328 = vunpack.c.l.b16 %v72
    %v329 = vunpack.c.l.b16 %v73
    %v330 = vunpack.c.l.b16 %v74
    %v331 = vunpack.c.l.b16 %v75
    %v332 = vunpack.c.l.b16 %v76
    %v333 = vunpack.c.l.b16 %v77
    %v334 = vunpack.c.l.b16 %v78
    %v335 = vunpack.c.l.b16 %v79
    %v336 = vunpack.c.l.b16 %v80
    %v337 = vunpack.c.l.b16 %v81
    %v338 = vunpack.c.l.b16 %v82
    %v339 = vunpack.c.l.b16 %v83
    %v340 = vunpack.c.l.b16 %v84
    %v341 = vunpack.c.l.b16 %v85
    %v342 = vunpack.c.l.b16 %v86
    %v343 = vunpack.c.l.b16 %v87
    %v344 = vunpack.c.l.b16 %v88
    %v345 = vunpack.c.l.b16 %v89
    %v346 = vunpack.c.l.b16 %v90
    %v347 = vunpack.c.l.b16 %v91
    %v348 = vpack.c.b16 %v317, %v316
    %v349 = vpack.c.b16 %v319, %v318
    %v350 = vpack.c.b16 %v321, %v320
    %v351 = vpack.c.b16 %v323, %v322
    %v352 = vpack.c.b16 %v325, %v324
    %v353 = vpack.c.b16 %v327, %v326
    %v354 = vpack.c.b16 %v329, %v328
    %v355 = vpack.c.b16 %v331, %v330
    %v356 = vpack.c.b16 %v333, %v332
    %v357 = vpack.c.b16 %v335, %v334
    %v358 = vpack.c.b16 %v337, %v336
    %v359 = vpack.c.b16 %v339, %v338
    %v360 = vpack.c.b16 %v341, %v340
    %v361 = vpack.c.b16 %v343, %v342
    %v362 = vpack.c.b16 %v345, %v344
    %v363 = vpack.c.b16 %v347, %v346
    %vm364 = vcmask 261120
    %v366 = vsel %vm364, %v348, 0
    %v369 = vsel %vm364, %v349, 0
    %v372 = vsel %vm364, %v350, 0
    %v375 = vsel %vm364, %v351, 0
    %v378 = vsel %vm364, %v352, 0
    %v381 = vsel %vm364, %v353, 0
    %v384 = vsel %vm364, %v354, 0
    %v387 = vsel %vm364, %v355, 0
    %v390 = vsel %vm364, %v356, 0
    %v393 = vsel %vm364, %v357, 0
    %v396 = vsel %vm364, %v358, 0
    %v399 = vsel %vm364, %v359, 0
    %v402 = vsel %vm364, %v360, 0
    %v405 = vsel %vm364, %v361, 0
    %v408 = vsel %vm364, %v362, 0
    %v411 = vsel %vm364, %v363, 0
    %v414 = vsel %vm364, %v52, 0
    %v417 = vsel %vm364, %v53, 0
    %v420 = vsel %vm364, %v54, 0
    %v423 = vsel %vm364, %v55, 0
    %v426 = vsel %vm364, %v56, 0
    %v429 = vsel %vm364, %v57, 0
    %v432 = vsel %vm364, %v58, 0
    %v435 = vsel %vm364, %v59, 0
    %437 = vmatprep.subr.bf16.mxu0 0
    %438 = vmatpush1.bf16.xpose.msra.mxu0 %v414
    %439 = vmatprep.subr.bf16.mxu0 0
    %440 = vmatpush1.bf16.xpose.msra.mxu0 %v417
    %441 = vmatprep.subr.bf16.mxu0 0
    %442 = vmatpush1.bf16.xpose.msra.mxu0 %v420
    %443 = vmatprep.subr.bf16.mxu0 0
    %444 = vmatpush1.bf16.xpose.msra.mxu0 %v423
    %445 = vmatprep.subr.bf16.mxu0 0
    %446 = vmatpush1.bf16.xpose.msra.mxu0 %v426
    %447 = vmatprep.subr.bf16.mxu0 0
    %448 = vmatpush1.bf16.xpose.msra.mxu0 %v429
    %449 = vmatprep.subr.bf16.mxu0 0
    %450 = vmatpush1.bf16.xpose.msra.mxu0 %v432
    %451 = vmatprep.subr.bf16.mxu0 0
    %452 = vmatpush1.bf16.xpose.msra.mxu0 %v435
    %453 = vmatprep.subr.bf16.mxu0 0
    %454 = vmatpush1.bf16.xpose.msra.mxu0 0
    %455 = vmatprep.subr.bf16.mxu0 0
    %456 = vmatpush1.bf16.xpose.msra.mxu0 0
    %457 = vmatprep.subr.bf16.mxu0 0
    %458 = vmatpush1.bf16.xpose.msra.mxu0 0
    %459 = vmatprep.subr.bf16.mxu0 0
    %460 = vmatpush1.bf16.xpose.msra.mxu0 0
    %461 = vmatprep.subr.bf16.mxu0 0
    %462 = vmatpush1.bf16.xpose.msra.mxu0 0
    %463 = vmatprep.subr.bf16.mxu0 0
    %464 = vmatpush1.bf16.xpose.msra.mxu0 0
    %465 = vmatprep.subr.bf16.mxu0 0
    %466 = vmatpush1.bf16.xpose.msra.mxu0 0
    %467 = vmatprep.subr.bf16.mxu0 0
    %468 = vmatpush1.bf16.xpose.msra.mxu0 0
    %469 = vmatprep.mubr.bf16.mxu0 0
    %470 = vmatmul.mubr.bf16.gmra.mrb[0].mxu0 %v366
    %v471 = vpop.f32.mrb[0].mxu0
    %v472 = vadd.f32 %v127, %v471
    %v473 = vpop.f32.mrb[0].mxu0
    %v474 = vpop.f32.mrb[0].mxu0
    %v475 = vadd.f32 %v132, %v474
    %v476 = vpop.f32.mrb[0].mxu0
    %477 = vmatprep.mubr.bf16.mxu0 0
    %478 = vmatmul.mubr.bf16.gmra.mrb[0].mxu0 %v369
    %v479 = vpop.f32.mrb[0].mxu0
    %v480 = vadd.f32 %v137, %v479
    %v481 = vpop.f32.mrb[0].mxu0
    %v482 = vpop.f32.mrb[0].mxu0
    %v483 = vadd.f32 %v142, %v482
    %v484 = vpop.f32.mrb[0].mxu0
    %485 = vmatprep.mubr.bf16.mxu0 0
    %486 = vmatmul.mubr.bf16.gmra.mrb[0].mxu0 %v372
    %v487 = vpop.f32.mrb[0].mxu0
    %v488 = vadd.f32 %v147, %v487
    %v489 = vpop.f32.mrb[0].mxu0
    %v490 = vpop.f32.mrb[0].mxu0
    %v491 = vadd.f32 %v152, %v490
    %v492 = vpop.f32.mrb[0].mxu0
    %493 = vmatprep.mubr.bf16.mxu0 0
    %494 = vmatmul.mubr.bf16.gmra.mrb[0].mxu0 %v375
    %v495 = vpop.f32.mrb[0].mxu0
    %v496 = vadd.f32 %v157, %v495
    %v497 = vpop.f32.mrb[0].mxu0
    %v498 = vpop.f32.mrb[0].mxu0
    %v499 = vadd.f32 %v162, %v498
    %v500 = vpop.f32.mrb[0].mxu0
    %501 = vmatprep.mubr.bf16.mxu0 0
    %502 = vmatmul.mubr.bf16.gmra.mrb[0].mxu0 %v378
    %v503 = vpop.f32.mrb[0].mxu0
    %v504 = vadd.f32 %v167, %v503
    %v505 = vpop.f32.mrb[0].mxu0
    %v506 = vpop.f32.mrb[0].mxu0
    %v507 = vadd.f32 %v172, %v506
    %v508 = vpop.f32.mrb[0].mxu0
    %509 = vmatprep.mubr.bf16.mxu0 0
    %510 = vmatmul.mubr.bf16.gmra.mrb[0].mxu0 %v381
    %v511 = vpop.f32.mrb[0].mxu0
    %v512 = vadd.f32 %v177, %v511
    %v513 = vpop.f32.mrb[0].mxu0
    %v514 = vpop.f32.mrb[0].mxu0
    %v515 = vadd.f32 %v182, %v514
    %v516 = vpop.f32.mrb[0].mxu0
    %517 = vmatprep.mubr.bf16.mxu0 0
    %518 = vmatmul.mubr.bf16.gmra.mrb[0].mxu0 %v384
    %v519 = vpop.f32.mrb[0].mxu0
    %v520 = vadd.f32 %v187, %v519
    %v521 = vpop.f32.mrb[0].mxu0
    %v522 = vpop.f32.mrb[0].mxu0
    %v523 = vadd.f32 %v192, %v522
    %v524 = vpop.f32.mrb[0].mxu0
    %525 = vmatprep.mubr.bf16.mxu0 0
    %526 = vmatmul.mubr.bf16.gmra.mrb[0].mxu0 %v387
    %v527 = vpop.f32.mrb[0].mxu0
    %v528 = vadd.f32 %v197, %v527
    %v529 = vpop.f32.mrb[0].mxu0
    %v530 = vpop.f32.mrb[0].mxu0
    %v531 = vadd.f32 %v202, %v530
    %v532 = vpop.f32.mrb[0].mxu0
    %533 = vmatprep.mubr.bf16.mxu0 0
    %534 = vmatmul.mubr.bf16.gmra.mrb[0].mxu0 %v390
    %v535 = vpop.f32.mrb[0].mxu0
    %v536 = vadd.f32 %v207, %v535
    %v537 = vpop.f32.mrb[0].mxu0
    %v538 = vpop.f32.mrb[0].mxu0
    %v539 = vadd.f32 %v212, %v538
    %v540 = vpop.f32.mrb[0].mxu0
    %541 = vmatprep.mubr.bf16.mxu0 0
    %542 = vmatmul.mubr.bf16.gmra.mrb[0].mxu0 %v393
    %v543 = vpop.f32.mrb[0].mxu0
    %v544 = vadd.f32 %v217, %v543
    %v545 = vpop.f32.mrb[0].mxu0
    %v546 = vpop.f32.mrb[0].mxu0
    %v547 = vadd.f32 %v222, %v546
    %v548 = vpop.f32.mrb[0].mxu0
    %549 = vmatprep.mubr.bf16.mxu0 0
    %550 = vmatmul.mubr.bf16.gmra.mrb[0].mxu0 %v396
    %v551 = vpop.f32.mrb[0].mxu0
    %v552 = vadd.f32 %v227, %v551
    %v553 = vpop.f32.mrb[0].mxu0
    %v554 = vpop.f32.mrb[0].mxu0
    %v555 = vadd.f32 %v232, %v554
    %v556 = vpop.f32.mrb[0].mxu0
    %557 = vmatprep.mubr.bf16.mxu0 0
    %558 = vmatmul.mubr.bf16.gmra.mrb[0].mxu0 %v399
    %v559 = vpop.f32.mrb[0].mxu0
    %v560 = vadd.f32 %v237, %v559
    %v561 = vpop.f32.mrb[0].mxu0
    %v562 = vpop.f32.mrb[0].mxu0
    %v563 = vadd.f32 %v242, %v562
    %v564 = vpop.f32.mrb[0].mxu0
    %565 = vmatprep.mubr.bf16.mxu0 0
    %566 = vmatmul.mubr.bf16.gmra.mrb[0].mxu0 %v402
    %v567 = vpop.f32.mrb[0].mxu0
    %v568 = vadd.f32 %v247, %v567
    %v569 = vpop.f32.mrb[0].mxu0
    %v570 = vpop.f32.mrb[0].mxu0
    %v571 = vadd.f32 %v252, %v570
    %v572 = vpop.f32.mrb[0].mxu0
    %573 = vmatprep.mubr.bf16.mxu0 0
    %574 = vmatmul.mubr.bf16.gmra.mrb[0].mxu0 %v405
    %v575 = vpop.f32.mrb[0].mxu0
    %v576 = vadd.f32 %v257, %v575
    %v577 = vpop.f32.mrb[0].mxu0
    %v578 = vpop.f32.mrb[0].mxu0
    %v579 = vadd.f32 %v262, %v578
    %v580 = vpop.f32.mrb[0].mxu0
    %581 = vmatprep.mubr.bf16.mxu0 0
    %582 = vmatmul.mubr.bf16.gmra.mrb[0].mxu0 %v408
    %v583 = vpop.f32.mrb[0].mxu0
    %v584 = vadd.f32 %v267, %v583
    %v585 = vpop.f32.mrb[0].mxu0
    %v586 = vpop.f32.mrb[0].mxu0
    %v587 = vadd.f32 %v272, %v586
    %v588 = vpop.f32.mrb[0].mxu0
    %589 = vmatprep.mubr.bf16.mxu0 0
    %590 = vmatmul.mubr.bf16.gmra.mrb[0].mxu0 %v411
    %v591 = vpop.f32.mrb[0].mxu0
    %v592 = vadd.f32 %v277, %v591
    %v593 = vpop.f32.mrb[0].mxu0
    %v594 = vpop.f32.mrb[0].mxu0
    %v595 = vadd.f32 %v282, %v594
    %v596 = vpop.f32.mrb[0].mxu0
    %597 = vdwg.mxu0
    %vm598 = vcmp.gt.f32.partialorder %v472, 0.0
    %vm599 = vcmp.gt.f32.partialorder %v475, 0.0
    %vm600 = vcmp.gt.f32.partialorder %v480, 0.0
    %vm601 = vcmp.gt.f32.partialorder %v483, 0.0
    %vm602 = vcmp.gt.f32.partialorder %v488, 0.0
    %vm603 = vcmp.gt.f32.partialorder %v491, 0.0
    %vm604 = vcmp.gt.f32.partialorder %v496, 0.0
    %vm605 = vcmp.gt.f32.partialorder %v499, 0.0
    %vm606 = vcmp.gt.f32.partialorder %v504, 0.0
    %vm607 = vcmp.gt.f32.partialorder %v507, 0.0
    %vm608 = vcmp.gt.f32.partialorder %v512, 0.0
    %vm609 = vcmp.gt.f32.partialorder %v515, 0.0
    %vm610 = vcmp.gt.f32.partialorder %v520, 0.0
    %vm611 = vcmp.gt.f32.partialorder %v523, 0.0
    %vm612 = vcmp.gt.f32.partialorder %v528, 0.0
    %vm613 = vcmp.gt.f32.partialorder %v531, 0.0
    %vm614 = vcmp.gt.f32.partialorder %v536, 0.0
    %vm615 = vcmp.gt.f32.partialorder %v539, 0.0
    %vm616 = vcmp.gt.f32.partialorder %v544, 0.0
    %vm617 = vcmp.gt.f32.partialorder %v547, 0.0
    %vm618 = vcmp.gt.f32.partialorder %v552, 0.0
    %vm619 = vcmp.gt.f32.partialorder %v555, 0.0
    %vm620 = vcmp.gt.f32.partialorder %v560, 0.0
    %vm621 = vcmp.gt.f32.partialorder %v563, 0.0
    %vm622 = vcmp.gt.f32.partialorder %v568, 0.0
    %vm623 = vcmp.gt.f32.partialorder %v571, 0.0
    %vm624 = vcmp.gt.f32.partialorder %v576, 0.0
    %vm625 = vcmp.gt.f32.partialorder %v579, 0.0
    %vm626 = vcmp.gt.f32.partialorder %v584, 0.0
    %vm627 = vcmp.gt.f32.partialorder %v587, 0.0
    %vm628 = vcmp.gt.f32.partialorder %v592, 0.0
    %vm629 = vcmp.gt.f32.partialorder %v595, 0.0
    %v630 = vmul.f32 %v472, 0.1
    %v631 = vmul.f32 %v475, 0.1
    %v632 = vmul.f32 %v480, 0.1
    %v633 = vmul.f32 %v483, 0.1
    %v634 = vmul.f32 %v488, 0.1
    %v635 = vmul.f32 %v491, 0.1
    %v636 = vmul.f32 %v496, 0.1
    %v637 = vmul.f32 %v499, 0.1
    %v638 = vmul.f32 %v504, 0.1
    %v639 = vmul.f32 %v507, 0.1
    %v640 = vmul.f32 %v512, 0.1
    %v641 = vmul.f32 %v515, 0.1
    %v642 = vmul.f32 %v520, 0.1
    %v643 = vmul.f32 %v523, 0.1
    %v644 = vmul.f32 %v528, 0.1
    %v645 = vmul.f32 %v531, 0.1
    %v646 = vmul.f32 %v536, 0.1
    %v647 = vmul.f32 %v539, 0.1
    %v648 = vmul.f32 %v544, 0.1
    %v649 = vmul.f32 %v547, 0.1
    %v650 = vmul.f32 %v552, 0.1
    %v651 = vmul.f32 %v555, 0.1
    %v652 = vmul.f32 %v560, 0.1
    %v653 = vmul.f32 %v563, 0.1
    %v654 = vmul.f32 %v568, 0.1
    %v655 = vmul.f32 %v571, 0.1
    %v656 = vmul.f32 %v576, 0.1
    %v657 = vmul.f32 %v579, 0.1
    %v658 = vmul.f32 %v584, 0.1
    %v659 = vmul.f32 %v587, 0.1
    %v660 = vmul.f32 %v592, 0.1
    %v661 = vmul.f32 %v595, 0.1
    %v662 = vsel %vm598, %v472, %v630
    %v663 = vsel %vm599, %v475, %v631
    %v664 = vsel %vm600, %v480, %v632
    %v665 = vsel %vm601, %v483, %v633
    %v666 = vsel %vm602, %v488, %v634
    %v667 = vsel %vm603, %v491, %v635
    %v668 = vsel %vm604, %v496, %v636
    %v669 = vsel %vm605, %v499, %v637
    %v670 = vsel %vm606, %v504, %v638
    %v671 = vsel %vm607, %v507, %v639
    %v672 = vsel %vm608, %v512, %v640
    %v673 = vsel %vm609, %v515, %v641
    %v674 = vsel %vm610, %v520, %v642
    %v675 = vsel %vm611, %v523, %v643
    %v676 = vsel %vm612, %v528, %v644
    %v677 = vsel %vm613, %v531, %v645
    %v678 = vsel %vm614, %v536, %v646
    %v679 = vsel %vm615, %v539, %v647
    %v680 = vsel %vm616, %v544, %v648
    %v681 = vsel %vm617, %v547, %v649
    %v682 = vsel %vm618, %v552, %v650
    %v683 = vsel %vm619, %v555, %v651
    %v684 = vsel %vm620, %v560, %v652
    %v685 = vsel %vm621, %v563, %v653
    %v686 = vsel %vm622, %v568, %v654
    %v687 = vsel %vm623, %v571, %v655
    %v688 = vsel %vm624, %v576, %v656
    %v689 = vsel %vm625, %v579, %v657
    %v690 = vsel %vm626, %v584, %v658
    %v691 = vsel %vm627, %v587, %v659
    %v692 = vsel %vm628, %v592, %v660
    %v693 = vsel %vm629, %v595, %v661
    %v694 = vpack.c.bf16 %v663, %v662
    %v695 = vpack.c.bf16 %v665, %v664
    %v696 = vpack.c.bf16 %v667, %v666
    %v697 = vpack.c.bf16 %v669, %v668
    %v698 = vpack.c.bf16 %v671, %v670
    %v699 = vpack.c.bf16 %v673, %v672
    %v700 = vpack.c.bf16 %v675, %v674
    %v701 = vpack.c.bf16 %v677, %v676
    %v702 = vpack.c.bf16 %v679, %v678
    %v703 = vpack.c.bf16 %v681, %v680
    %v704 = vpack.c.bf16 %v683, %v682
    %v705 = vpack.c.bf16 %v685, %v684
    %v706 = vpack.c.bf16 %v687, %v686
    %v707 = vpack.c.bf16 %v689, %v688
    %v708 = vpack.c.bf16 %v691, %v690
    %v709 = vpack.c.bf16 %v693, %v692
    %v710 = vld [vmem:[%s3] sm:$0xff]
    %v711 = vld [vmem:[%s3 + $0x8] sm:$0xff]
    %v712 = vld [vmem:[%s3 + $0x10] sm:$0xff]
    %v713 = vld [vmem:[%s3 + $0x18] sm:$0xff]
    %v714 = vld [vmem:[%s3 + $0x20] sm:$0xff]
    %v715 = vld [vmem:[%s3 + $0x28] sm:$0xff]
    %v716 = vld [vmem:[%s3 + $0x30] sm:$0xff]
    %v717 = vld [vmem:[%s3 + $0x38] sm:$0xff]
    %v718 = vld [vmem:[%s3 + $0x40] sm:$0xff]
    %v719 = vld [vmem:[%s3 + $0x48] sm:$0xff]
    %v720 = vld [vmem:[%s3 + $0x50] sm:$0xff]
    %v721 = vld [vmem:[%s3 + $0x58] sm:$0xff]
    %v722 = vld [vmem:[%s3 + $0x60] sm:$0xff]
    %v723 = vld [vmem:[%s3 + $0x68] sm:$0xff]
    %v724 = vld [vmem:[%s3 + $0x70] sm:$0xff]
    %v725 = vld [vmem:[%s3 + $0x78] sm:$0xff]
    %v726 = vld [vmem:[%s4] sm:$0xff]
    %v727 = vld [vmem:[%s4 + $0x8] sm:$0xff]
    %v728 = vld [vmem:[%s4 + $0x10] sm:$0xff]
    %v729 = vld [vmem:[%s4 + $0x18] sm:$0xff]
    %v730 = vld [vmem:[%s4 + $0x20] sm:$0xff]
    %v731 = vld [vmem:[%s4 + $0x28] sm:$0xff]
    %v732 = vld [vmem:[%s4 + $0x30] sm:$0xff]
    %v733 = vld [vmem:[%s4 + $0x38] sm:$0xff]
    %v734 = vld [vmem:[%s4 + $0x40] sm:$0xff]
    %v735 = vld [vmem:[%s4 + $0x48] sm:$0xff]
    %v736 = vld [vmem:[%s4 + $0x50] sm:$0xff]
    %v737 = vld [vmem:[%s4 + $0x58] sm:$0xff]
    %v738 = vld [vmem:[%s4 + $0x60] sm:$0xff]
    %v739 = vld [vmem:[%s4 + $0x68] sm:$0xff]
    %v740 = vld [vmem:[%s4 + $0x70] sm:$0xff]
    %v741 = vld [vmem:[%s4 + $0x78] sm:$0xff]
    %743 = vset.pattern.permute.xlu0 0
    %744 = vperm.xlu0 %743, %v726
    %v745 = vpop.permute.xlu0 %744
    %748 = vset.pattern.permute.xlu0 0
    %749 = vperm.xlu0 %748, %v727
    %v750 = vpop.permute.xlu0 %749
    %753 = vset.pattern.permute.xlu0 0
    %754 = vperm.xlu0 %753, %v728
    %v755 = vpop.permute.xlu0 %754
    %758 = vset.pattern.permute.xlu0 0
    %759 = vperm.xlu0 %758, %v729
    %v760 = vpop.permute.xlu0 %759
    %763 = vset.pattern.permute.xlu0 0
    %764 = vperm.xlu0 %763, %v730
    %v765 = vpop.permute.xlu0 %764
    %768 = vset.pattern.permute.xlu0 0
    %769 = vperm.xlu0 %768, %v731
    %v770 = vpop.permute.xlu0 %769
    %773 = vset.pattern.permute.xlu0 0
    %774 = vperm.xlu0 %773, %v732
    %v775 = vpop.permute.xlu0 %774
    %778 = vset.pattern.permute.xlu0 0
    %779 = vperm.xlu0 %778, %v733
    %v780 = vpop.permute.xlu0 %779
    %783 = vset.pattern.permute.xlu0 0
    %784 = vperm.xlu0 %783, %v734
    %v785 = vpop.permute.xlu0 %784
    %788 = vset.pattern.permute.xlu0 0
    %789 = vperm.xlu0 %788, %v735
    %v790 = vpop.permute.xlu0 %789
    %793 = vset.pattern.permute.xlu0 0
    %794 = vperm.xlu0 %793, %v736
    %v795 = vpop.permute.xlu0 %794
    %798 = vset.pattern.permute.xlu0 0
    %799 = vperm.xlu0 %798, %v737
    %v800 = vpop.permute.xlu0 %799
    %803 = vset.pattern.permute.xlu0 0
    %804 = vperm.xlu0 %803, %v738
    %v805 = vpop.permute.xlu0 %804
    %808 = vset.pattern.permute.xlu0 0
    %809 = vperm.xlu0 %808, %v739
    %v810 = vpop.permute.xlu0 %809
    %813 = vset.pattern.permute.xlu0 0
    %814 = vperm.xlu0 %813, %v740
    %v815 = vpop.permute.xlu0 %814
    %818 = vset.pattern.permute.xlu0 0
    %819 = vperm.xlu0 %818, %v741
    %v820 = vpop.permute.xlu0 %819
    %v838 = vunpack.c.l.b16 %v710
    %v839 = vunpack.c.h.b16 %v710
    %v840 = vunpack.c.l.b16 %v711
    %v841 = vunpack.c.h.b16 %v711
    %v842 = vunpack.c.l.b16 %v712
    %v843 = vunpack.c.h.b16 %v712
    %v844 = vunpack.c.l.b16 %v713
    %v845 = vunpack.c.h.b16 %v713
    %v846 = vunpack.c.l.b16 %v714
    %v847 = vunpack.c.h.b16 %v714
    %v848 = vunpack.c.l.b16 %v715
    %v849 = vunpack.c.h.b16 %v715
    %v850 = vunpack.c.l.b16 %v716
    %v851 = vunpack.c.h.b16 %v716
    %v852 = vunpack.c.l.b16 %v717
    %v853 = vunpack.c.h.b16 %v717
    %v854 = vunpack.c.l.b16 %v718
    %v855 = vunpack.c.h.b16 %v718
    %v856 = vunpack.c.l.b16 %v719
    %v857 = vunpack.c.h.b16 %v719
    %v858 = vunpack.c.l.b16 %v720
    %v859 = vunpack.c.h.b16 %v720
    %v860 = vunpack.c.l.b16 %v721
    %v861 = vunpack.c.h.b16 %v721
    %v862 = vunpack.c.l.b16 %v722
    %v863 = vunpack.c.h.b16 %v722
    %v864 = vunpack.c.l.b16 %v723
    %v865 = vunpack.c.h.b16 %v723
    %v866 = vunpack.c.l.b16 %v724
    %v867 = vunpack.c.h.b16 %v724
    %v868 = vunpack.c.l.b16 %v725
    %v869 = vunpack.c.h.b16 %v725
    %v870 = vpack.c.b16 %v840, %v838
    %v871 = vpack.c.b16 %v841, %v839
    %v872 = vpack.c.b16 %v844, %v842
    %v873 = vpack.c.b16 %v845, %v843
    %v874 = vpack.c.b16 %v848, %v846
    %v875 = vpack.c.b16 %v849, %v847
    %v876 = vpack.c.b16 %v852, %v850
    %v877 = vpack.c.b16 %v853, %v851
    %v878 = vpack.c.b16 %v856, %v854
    %v879 = vpack.c.b16 %v857, %v855
    %v880 = vpack.c.b16 %v860, %v858
    %v881 = vpack.c.b16 %v861, %v859
    %v882 = vpack.c.b16 %v864, %v862
    %v883 = vpack.c.b16 %v865, %v863
    %v884 = vpack.c.b16 %v868, %v866
    %v885 = vpack.c.b16 %v869, %v867
    %902 = vmatprep.subr.bf16.mxu0 0
    %903 = vmatpush1.bf16.msra.mxu0 %v694
    %904 = vmatprep.subr.bf16.mxu0 0
    %905 = vmatpush1.bf16.msra.mxu0 %v695
    %906 = vmatprep.subr.bf16.mxu0 0
    %907 = vmatpush1.bf16.msra.mxu0 %v696
    %908 = vmatprep.subr.bf16.mxu0 0
    %909 = vmatpush1.bf16.msra.mxu0 %v697
    %910 = vmatprep.subr.bf16.mxu0 0
    %911 = vmatpush1.bf16.msra.mxu0 %v698
    %912 = vmatprep.subr.bf16.mxu0 0
    %913 = vmatpush1.bf16.msra.mxu0 %v699
    %914 = vmatprep.subr.bf16.mxu0 0
    %915 = vmatpush1.bf16.msra.mxu0 %v700
    %916 = vmatprep.subr.bf16.mxu0 0
    %917 = vmatpush1.bf16.msra.mxu0 %v701
    %918 = vmatprep.subr.bf16.mxu0 0
    %919 = vmatpush1.bf16.msra.mxu0 %v702
    %920 = vmatprep.subr.bf16.mxu0 0
    %921 = vmatpush1.bf16.msra.mxu0 %v703
    %922 = vmatprep.subr.bf16.mxu0 0
    %923 = vmatpush1.bf16.msra.mxu0 %v704
    %924 = vmatprep.subr.bf16.mxu0 0
    %925 = vmatpush1.bf16.msra.mxu0 %v705
    %926 = vmatprep.subr.bf16.mxu0 0
    %927 = vmatpush1.bf16.msra.mxu0 %v706
    %928 = vmatprep.subr.bf16.mxu0 0
    %929 = vmatpush1.bf16.msra.mxu0 %v707
    %930 = vmatprep.subr.bf16.mxu0 0
    %931 = vmatpush1.bf16.msra.mxu0 %v708
    %932 = vmatprep.subr.bf16.mxu0 0
    %933 = vmatpush1.bf16.msra.mxu0 %v709
    %934 = vmatprep.mubr.bf16.mxu0 %v871
    %935 = vmatmul.mubr.bf16.gmra.mrb[0].mxu0 %v870
    %v936 = vpop.f32.mrb[0].mxu0
    %v937 = vadd.f32 %v745, %v936
    %v938 = vpop.f32.mrb[0].mxu0
    %v939 = vpop.f32.mrb[0].mxu0
    %v940 = vadd.f32 %v750, %v939
    %v941 = vpop.f32.mrb[0].mxu0
    %942 = vmatprep.mubr.bf16.mxu0 %v873
    %943 = vmatmul.mubr.bf16.gmra.mrb[0].mxu0 %v872
    %v944 = vpop.f32.mrb[0].mxu0
    %v945 = vadd.f32 %v755, %v944
    %v946 = vpop.f32.mrb[0].mxu0
    %v947 = vpop.f32.mrb[0].mxu0
    %v948 = vadd.f32 %v760, %v947
    %v949 = vpop.f32.mrb[0].mxu0
    %950 = vmatprep.mubr.bf16.mxu0 %v875
    %951 = vmatmul.mubr.bf16.gmra.mrb[0].mxu0 %v874
    %v952 = vpop.f32.mrb[0].mxu0
    %v953 = vadd.f32 %v765, %v952
    %v954 = vpop.f32.mrb[0].mxu0
    %v955 = vpop.f32.mrb[0].mxu0
    %v956 = vadd.f32 %v770, %v955
    %v957 = vpop.f32.mrb[0].mxu0
    %958 = vmatprep.mubr.bf16.mxu0 %v877
    %959 = vmatmul.mubr.bf16.gmra.mrb[0].mxu0 %v876
    %v960 = vpop.f32.mrb[0].mxu0
    %v961 = vadd.f32 %v775, %v960
    %v962 = vpop.f32.mrb[0].mxu0
    %v963 = vpop.f32.mrb[0].mxu0
    %v964 = vadd.f32 %v780, %v963
    %v965 = vpop.f32.mrb[0].mxu0
    %966 = vmatprep.mubr.bf16.mxu0 %v879
    %967 = vmatmul.mubr.bf16.gmra.mrb[0].mxu0 %v878
    %v968 = vpop.f32.mrb[0].mxu0
    %v969 = vadd.f32 %v785, %v968
    %v970 = vpop.f32.mrb[0].mxu0
    %v971 = vpop.f32.mrb[0].mxu0
    %v972 = vadd.f32 %v790, %v971
    %v973 = vpop.f32.mrb[0].mxu0
    %974 = vmatprep.mubr.bf16.mxu0 %v881
    %975 = vmatmul.mubr.bf16.gmra.mrb[0].mxu0 %v880
    %v976 = vpop.f32.mrb[0].mxu0
    %v977 = vadd.f32 %v795, %v976
    %v978 = vpop.f32.mrb[0].mxu0
    %v979 = vpop.f32.mrb[0].mxu0
    %v980 = vadd.f32 %v800, %v979
    %v981 = vpop.f32.mrb[0].mxu0
    %982 = vmatprep.mubr.bf16.mxu0 %v883
    %983 = vmatmul.mubr.bf16.gmra.mrb[0].mxu0 %v882
    %v984 = vpop.f32.mrb[0].mxu0
    %v985 = vadd.f32 %v805, %v984
    %v986 = vpop.f32.mrb[0].mxu0
    %v987 = vpop.f32.mrb[0].mxu0
    %v988 = vadd.f32 %v810, %v987
    %v989 = vpop.f32.mrb[0].mxu0
    %990 = vmatprep.mubr.bf16.mxu0 %v885
    %991 = vmatmul.mubr.bf16.gmra.mrb[0].mxu0 %v884
    %v992 = vpop.f32.mrb[0].mxu0
    %v993 = vadd.f32 %v815, %v992
    %v994 = vpop.f32.mrb[0].mxu0
    %v995 = vpop.f32.mrb[0].mxu0
    %v996 = vadd.f32 %v820, %v995
    %v997 = vpop.f32.mrb[0].mxu0
    %998 = vdwg.mxu0
    %vm999 = vcmp.gt.f32.partialorder %v937, 0.0
    %vm1000 = vcmp.gt.f32.partialorder %v940, 0.0
    %vm1001 = vcmp.gt.f32.partialorder %v945, 0.0
    %vm1002 = vcmp.gt.f32.partialorder %v948, 0.0
    %vm1003 = vcmp.gt.f32.partialorder %v953, 0.0
    %vm1004 = vcmp.gt.f32.partialorder %v956, 0.0
    %vm1005 = vcmp.gt.f32.partialorder %v961, 0.0
    %vm1006 = vcmp.gt.f32.partialorder %v964, 0.0
    %vm1007 = vcmp.gt.f32.partialorder %v969, 0.0
    %vm1008 = vcmp.gt.f32.partialorder %v972, 0.0
    %vm1009 = vcmp.gt.f32.partialorder %v977, 0.0
    %vm1010 = vcmp.gt.f32.partialorder %v980, 0.0
    %vm1011 = vcmp.gt.f32.partialorder %v985, 0.0
    %vm1012 = vcmp.gt.f32.partialorder %v988, 0.0
    %vm1013 = vcmp.gt.f32.partialorder %v993, 0.0
    %vm1014 = vcmp.gt.f32.partialorder %v996, 0.0
    %v1015 = vmul.f32 %v937, 0.1
    %v1016 = vmul.f32 %v940, 0.1
    %v1017 = vmul.f32 %v945, 0.1
    %v1018 = vmul.f32 %v948, 0.1
    %v1019 = vmul.f32 %v953, 0.1
    %v1020 = vmul.f32 %v956, 0.1
    %v1021 = vmul.f32 %v961, 0.1
    %v1022 = vmul.f32 %v964, 0.1
    %v1023 = vmul.f32 %v969, 0.1
    %v1024 = vmul.f32 %v972, 0.1
    %v1025 = vmul.f32 %v977, 0.1
    %v1026 = vmul.f32 %v980, 0.1
    %v1027 = vmul.f32 %v985, 0.1
    %v1028 = vmul.f32 %v988, 0.1
    %v1029 = vmul.f32 %v993, 0.1
    %v1030 = vmul.f32 %v996, 0.1
    %v1031 = vsel %vm999, %v937, %v1015
    %v1032 = vsel %vm1000, %v940, %v1016
    %v1033 = vsel %vm1001, %v945, %v1017
    %v1034 = vsel %vm1002, %v948, %v1018
    %v1035 = vsel %vm1003, %v953, %v1019
    %v1036 = vsel %vm1004, %v956, %v1020
    %v1037 = vsel %vm1005, %v961, %v1021
    %v1038 = vsel %vm1006, %v964, %v1022
    %v1039 = vsel %vm1007, %v969, %v1023
    %v1040 = vsel %vm1008, %v972, %v1024
    %v1041 = vsel %vm1009, %v977, %v1025
    %v1042 = vsel %vm1010, %v980, %v1026
    %v1043 = vsel %vm1011, %v985, %v1027
    %v1044 = vsel %vm1012, %v988, %v1028
    %v1045 = vsel %vm1013, %v993, %v1029
    %v1046 = vsel %vm1014, %v996, %v1030
    %v1047 = vpack.c.bf16 %v1032, %v1031
    %v1048 = vpack.c.bf16 %v1034, %v1033
    %v1049 = vpack.c.bf16 %v1036, %v1035
    %v1050 = vpack.c.bf16 %v1038, %v1037
    %v1051 = vpack.c.bf16 %v1040, %v1039
    %v1052 = vpack.c.bf16 %v1042, %v1041
    %v1053 = vpack.c.bf16 %v1044, %v1043
    %v1054 = vpack.c.bf16 %v1046, %v1045
    %v1055 = vld [vmem:[%s5] sm:$0xf]
    %v1056 = vld [vmem:[%s5 + $0x4] sm:$0xf]
    %v1057 = vld [vmem:[%s5 + $0x8] sm:$0xf]
    %v1058 = vld [vmem:[%s5 + $0xc] sm:$0xf]
    %v1059 = vld [vmem:[%s5 + $0x10] sm:$0xf]
    %v1060 = vld [vmem:[%s5 + $0x14] sm:$0xf]
    %v1061 = vld [vmem:[%s5 + $0x18] sm:$0xf]
    %v1062 = vld [vmem:[%s5 + $0x1c] sm:$0xf]
    %v1063 = vld [vmem:[%s6] sm:$0xff]
    %v1064 = vld [vmem:[%s6 + $0x8] sm:$0xff]
    %v1065 = vld [vmem:[%s6 + $0x10] sm:$0xff]
    %v1066 = vld [vmem:[%s6 + $0x18] sm:$0xff]
    %v1067 = vld [vmem:[%s6 + $0x20] sm:$0xff]
    %v1068 = vld [vmem:[%s6 + $0x28] sm:$0xff]
    %v1069 = vld [vmem:[%s6 + $0x30] sm:$0xff]
    %v1070 = vld [vmem:[%s6 + $0x38] sm:$0xff]
    %1072 = vset.pattern.permute.xlu0 0
    %1073 = vperm.xlu0 %1072, %v1063
    %v1074 = vpop.permute.xlu0 %1073
    %1077 = vset.pattern.permute.xlu0 0
    %1078 = vperm.xlu0 %1077, %v1064
    %v1079 = vpop.permute.xlu0 %1078
    %1082 = vset.pattern.permute.xlu0 0
    %1083 = vperm.xlu0 %1082, %v1065
    %v1084 = vpop.permute.xlu0 %1083
    %1087 = vset.pattern.permute.xlu0 0
    %1088 = vperm.xlu0 %1087, %v1066
    %v1089 = vpop.permute.xlu0 %1088
    %1092 = vset.pattern.permute.xlu0 0
    %1093 = vperm.xlu0 %1092, %v1067
    %v1094 = vpop.permute.xlu0 %1093
    %1097 = vset.pattern.permute.xlu0 0
    %1098 = vperm.xlu0 %1097, %v1068
    %v1099 = vpop.permute.xlu0 %1098
    %1102 = vset.pattern.permute.xlu0 0
    %1103 = vperm.xlu0 %1102, %v1069
    %v1104 = vpop.permute.xlu0 %1103
    %1107 = vset.pattern.permute.xlu0 0
    %1108 = vperm.xlu0 %1107, %v1070
    %v1109 = vpop.permute.xlu0 %1108
    %v1119 = vunpack.c.l.b16 %v1055
    %v1120 = vunpack.c.l.b16 %v1056
    %v1121 = vunpack.c.l.b16 %v1057
    %v1122 = vunpack.c.l.b16 %v1058
    %v1123 = vunpack.c.l.b16 %v1059
    %v1124 = vunpack.c.l.b16 %v1060
    %v1125 = vunpack.c.l.b16 %v1061
    %v1126 = vunpack.c.l.b16 %v1062
    %v1127 = vpack.c.b16 %v1120, %v1119
    %v1128 = vpack.c.b16 %v1122, %v1121
    %v1129 = vpack.c.b16 %v1124, %v1123
    %v1130 = vpack.c.b16 %v1126, %v1125
    %1135 = vmatprep.subr.bf16.mxu0 0
    %1136 = vmatpush1.bf16.msra.mxu0 %v1047
    %1137 = vmatprep.subr.bf16.mxu0 0
    %1138 = vmatpush1.bf16.msra.mxu0 %v1048
    %1139 = vmatprep.subr.bf16.mxu0 0
    %1140 = vmatpush1.bf16.msra.mxu0 %v1049
    %1141 = vmatprep.subr.bf16.mxu0 0
    %1142 = vmatpush1.bf16.msra.mxu0 %v1050
    %1143 = vmatprep.subr.bf16.mxu0 0
    %1144 = vmatpush1.bf16.msra.mxu0 %v1051
    %1145 = vmatprep.subr.bf16.mxu0 0
    %1146 = vmatpush1.bf16.msra.mxu0 %v1052
    %1147 = vmatprep.subr.bf16.mxu0 0
    %1148 = vmatpush1.bf16.msra.mxu0 %v1053
    %1149 = vmatprep.subr.bf16.mxu0 0
    %1150 = vmatpush1.bf16.msra.mxu0 %v1054
    %1151 = vmatprep.subr.bf16.mxu0 0
    %1152 = vmatpush1.bf16.msra.mxu0 0
    %1153 = vmatprep.subr.bf16.mxu0 0
    %1154 = vmatpush1.bf16.msra.mxu0 0
    %1155 = vmatprep.subr.bf16.mxu0 0
    %1156 = vmatpush1.bf16.msra.mxu0 0
    %1157 = vmatprep.subr.bf16.mxu0 0
    %1158 = vmatpush1.bf16.msra.mxu0 0
    %1159 = vmatprep.subr.bf16.mxu0 0
    %1160 = vmatpush1.bf16.msra.mxu0 0
    %1161 = vmatprep.subr.bf16.mxu0 0
    %1162 = vmatpush1.bf16.msra.mxu0 0
    %1163 = vmatprep.subr.bf16.mxu0 0
    %1164 = vmatpush1.bf16.msra.mxu0 0
    %1165 = vmatprep.subr.bf16.mxu0 0
    %1166 = vmatpush1.bf16.msra.mxu0 0
    %1167 = vmatprep.mubr.bf16.mxu0 0
    %1168 = vmatmul.mubr.bf16.gmra.mrb[0].mxu0 %v1127
    %v1169 = vpop.f32.mrb[0].mxu0
    %v1170 = vadd.f32 %v1074, %v1169
    %v1171 = vpop.f32.mrb[0].mxu0
    %v1172 = vpop.f32.mrb[0].mxu0
    %v1173 = vadd.f32 %v1079, %v1172
    %v1174 = vpop.f32.mrb[0].mxu0
    %1175 = vmatprep.mubr.bf16.mxu0 0
    %1176 = vmatmul.mubr.bf16.gmra.mrb[0].mxu0 %v1128
    %v1177 = vpop.f32.mrb[0].mxu0
    %v1178 = vadd.f32 %v1084, %v1177
    %v1179 = vpop.f32.mrb[0].mxu0
    %v1180 = vpop.f32.mrb[0].mxu0
    %v1181 = vadd.f32 %v1089, %v1180
    %v1182 = vpop.f32.mrb[0].mxu0
    %1183 = vmatprep.mubr.bf16.mxu0 0
    %1184 = vmatmul.mubr.bf16.gmra.mrb[0].mxu0 %v1129
    %v1185 = vpop.f32.mrb[0].mxu0
    %v1186 = vadd.f32 %v1094, %v1185
    %v1187 = vpop.f32.mrb[0].mxu0
    %v1188 = vpop.f32.mrb[0].mxu0
    %v1189 = vadd.f32 %v1099, %v1188
    %v1190 = vpop.f32.mrb[0].mxu0
    %1191 = vmatprep.mubr.bf16.mxu0 0
    %1192 = vmatmul.mubr.bf16.gmra.mrb[0].mxu0 %v1130
    %v1193 = vpop.f32.mrb[0].mxu0
    %v1194 = vadd.f32 %v1104, %v1193
    %v1195 = vpop.f32.mrb[0].mxu0
    %v1196 = vpop.f32.mrb[0].mxu0
    %v1197 = vadd.f32 %v1109, %v1196
    %v1198 = vpop.f32.mrb[0].mxu0
    %1199 = vdwg.mxu0
    %vm1200 = vcmp.gt.f32.partialorder %v1170, 0.0
    %vm1201 = vcmp.gt.f32.partialorder %v1173, 0.0
    %vm1202 = vcmp.gt.f32.partialorder %v1178, 0.0
    %vm1203 = vcmp.gt.f32.partialorder %v1181, 0.0
    %vm1204 = vcmp.gt.f32.partialorder %v1186, 0.0
    %vm1205 = vcmp.gt.f32.partialorder %v1189, 0.0
    %vm1206 = vcmp.gt.f32.partialorder %v1194, 0.0
    %vm1207 = vcmp.gt.f32.partialorder %v1197, 0.0
    %v1208 = vmul.f32 %v1170, 0.1
    %v1209 = vmul.f32 %v1173, 0.1
    %v1210 = vmul.f32 %v1178, 0.1
    %v1211 = vmul.f32 %v1181, 0.1
    %v1212 = vmul.f32 %v1186, 0.1
    %v1213 = vmul.f32 %v1189, 0.1
    %v1214 = vmul.f32 %v1194, 0.1
    %v1215 = vmul.f32 %v1197, 0.1
    %v1216 = vsel %vm1200, %v1170, %v1208
    %v1217 = vsel %vm1201, %v1173, %v1209
    %v1218 = vsel %vm1202, %v1178, %v1210
    %v1219 = vsel %vm1203, %v1181, %v1211
    %v1220 = vsel %vm1204, %v1186, %v1212
    %v1221 = vsel %vm1205, %v1189, %v1213
    %v1222 = vsel %vm1206, %v1194, %v1214
    %v1223 = vsel %vm1207, %v1197, %v1215
    %v1224 = vld [vmem:[%s7] sm:$0xff]
    %v1225 = vld [vmem:[%s7 + $0x8] sm:$0xff]
    %v1226 = vld [vmem:[%s7 + $0x10] sm:$0xff]
    %v1227 = vld [vmem:[%s7 + $0x18] sm:$0xff]
    %v1228 = vld [vmem:[%s7 + $0x20] sm:$0xff]
    %v1229 = vld [vmem:[%s7 + $0x28] sm:$0xff]
    %v1230 = vld [vmem:[%s7 + $0x30] sm:$0xff]
    %v1231 = vld [vmem:[%s7 + $0x38] sm:$0xff]
    %1233 = vset.pattern.permute.xlu0 0
    %1234 = vperm.xlu0 %1233, %v1224
    %v1235 = vpop.permute.xlu0 %1234
    %1238 = vset.pattern.permute.xlu0 0
    %1239 = vperm.xlu0 %1238, %v1225
    %v1240 = vpop.permute.xlu0 %1239
    %1243 = vset.pattern.permute.xlu0 0
    %1244 = vperm.xlu0 %1243, %v1226
    %v1245 = vpop.permute.xlu0 %1244
    %1248 = vset.pattern.permute.xlu0 0
    %1249 = vperm.xlu0 %1248, %v1227
    %v1250 = vpop.permute.xlu0 %1249
    %1253 = vset.pattern.permute.xlu0 0
    %1254 = vperm.xlu0 %1253, %v1228
    %v1255 = vpop.permute.xlu0 %1254
    %1258 = vset.pattern.permute.xlu0 0
    %1259 = vperm.xlu0 %1258, %v1229
    %v1260 = vpop.permute.xlu0 %1259
    %1263 = vset.pattern.permute.xlu0 0
    %1264 = vperm.xlu0 %1263, %v1230
    %v1265 = vpop.permute.xlu0 %1264
    %1268 = vset.pattern.permute.xlu0 0
    %1269 = vperm.xlu0 %1268, %v1231
    %v1270 = vpop.permute.xlu0 %1269
    %v1272 = vmul.f32 %v1235, %v1216
    %v1273 = vmul.f32 %v1240, %v1217
    %v1274 = vmul.f32 %v1245, %v1218
    %v1275 = vmul.f32 %v1250, %v1219
    %v1276 = vmul.f32 %v1255, %v1220
    %v1277 = vmul.f32 %v1260, %v1221
    %v1278 = vmul.f32 %v1265, %v1222
    %v1279 = vmul.f32 %v1270, %v1223
    %v1280 = vadd.f32 %v1272, %v1273
    %v1281 = vadd.f32 %v1280, %v1274
    %v1282 = vadd.f32 %v1281, %v1275
    %v1283 = vadd.f32 %v1282, %v1276
    %v1284 = vadd.f32 %v1283, %v1277
    %v1285 = vadd.f32 %v1284, %v1278
    %v1286 = vadd.f32 %v1285, %v1279
    %v1287 = vrot.slane %v1286, 4
    %v1288 = vadd.f32 %v1286, %v1287
    %v1289 = vrot.slane %v1288, 2
    %v1290 = vadd.f32 %v1288, %v1289
    %v1291 = vrot.slane %v1290, 1
    %v1292 = vadd.f32 %v1290, %v1291
    %v1293 = vld [vmem:[#allocation2] sm:$0x1]
    %1295 = vset.pattern.permute.xlu0 0
    %1296 = vperm.xlu0 %1295, %v1293
    %v1297 = vpop.permute.xlu0 %1296
    %v1299 = vlaneseq
    %v1300 = vshrl.u32 %v1299, 7
    %v1301 = vsub.s32 0, %v1300
    %v1302 = vrot.slane %v1297, %v1301
    %v1303 = vadd.f32 %v1292, %v1302
    %1304 = vst [vmem:[#allocation3] sm:$0x1] %v1303
    // Predicated region
    $region38: #{tpu_custom_call.1} parent=1 // pred_check
      _
    $region39: #{tpu_custom_call.1} parent=1 // pred_check_branch
      %1306 = sbr.rel (0) target = $region41
    $region40: #{tpu_custom_call.1} parent=1 // pred_region
      %s1308 = ssub.s32 16, 16
      %1309 = vsyncadd [#allocation4], %s1308
      %s1311 = sshll.u32 [#allocation3], 4
      %s1312 = int_to_ptr.vmem [resolvable:$true] %s1311
      %1314 = dma.vmem_to_hbm [thread:$0]  %s1312, 16, %s9, [#allocation4]
    $region41: #{tpu_custom_call.1} parent=1 // pred_fallthru
      _
    // Predicated region
    $region42: #{tpu_custom_call.1} parent=1 // pred_check
      _
    $region43: #{tpu_custom_call.1} parent=1 // pred_check_branch
      %1316 = sbr.rel (0) target = $region45
    $region44: #{tpu_custom_call.1} parent=1 // pred_region
      %1317 = dma.done [#allocation4], 16
    $region45: #{tpu_custom_call.1} parent=1 // pred_fallthru
      _
    %1318 = vsyncpa [#allocation4], 1

</llo_original>
